<compile_context>
chip_gen: v6e
topology: v6e:2x2x1
jax: 0.10.0
libtpu: 0.0.40
codegen_flags: <defaults>
</compile_context>

<pallas_src>
import jax
import jax.numpy as jnp
from jax.experimental import pallas as pl
from jax.experimental.pallas import tpu as pltpu


def _round_up(n, m):
    return ((n + m - 1) // m) * m


def _round_down(n, m):
    return (n // m) * m


def dual_mlp_kernel(x_ref, w1_ref, b1_ref, w2_ref, b2_ref,
                    wr_ref, br_ref, wt_ref, bt_ref,
                    rain_ref, temp_ref):
    x = x_ref[...]                                                   # [TB, input_size]

    # fc1 -> relu   (dropout1 is identity in eval mode)
    h1 = jnp.dot(x, w1_ref[...], preferred_element_type=jnp.float32) + b1_ref[...]
    h1 = jnp.maximum(h1, 0.0)                                        # [TB, 64]

    # fc2 -> relu   (dropout2 is identity in eval mode)
    h2 = jnp.dot(h1, w2_ref[...], preferred_element_type=jnp.float32) + b2_ref[...]
    h2 = jnp.maximum(h2, 0.0)                                        # [TB, 32]

    # two output heads, written as two narrow (masked-store) streams
    rain_ref[...] = (jnp.dot(h2, wr_ref[...], preferred_element_type=jnp.float32)
                     + br_ref[...])                                  # [TB, rain_classes]
    temp_ref[...] = (jnp.dot(h2, wt_ref[...], preferred_element_type=jnp.float32)
                     + bt_ref[...])                                  # [TB, temp_classes]


def prepare_params_from_torch(w1, b1, w2, b2, w_rain, b_rain, w_temp, b_temp):
    """One-time parameter prep: nn.Linear stores [out, in] weights and 1-D biases;
    convert to [in, out] weights and [1, out] biases.  Call once, outside forward."""
    t = lambda w: jnp.asarray(w, jnp.float32).T
    r = lambda b: jnp.asarray(b, jnp.float32).reshape(1, -1)
    return {"w1": t(w1), "b1": r(b1), "w2": t(w2), "b2": r(b2),
            "w_rain": t(w_rain), "b_rain": r(b_rain),
            "w_temp": t(w_temp), "b_temp": r(b_temp)}


def dual_output_nn(x, params, *, tb=8192):
    """Forward pass of DualOutputNN (eval mode) as a batch-tiled Pallas TPU kernel.

    x: [B, input_size] float32
    params: dict of w1,b1,w2,b2,w_rain,b_rain,w_temp,b_temp (weights [in, out], biases [1, out])
    returns (rain_logits [B, rain_classes], temp_logits [B, temp_classes])
    """
    B, input_size = x.shape
    rain_classes = params["w_rain"].shape[1]
    temp_classes = params["w_temp"].shape[1]
    n_head = rain_classes + temp_classes

    if B == 0:  # degenerate-batch guard
        return (jnp.zeros((0, rain_classes), jnp.float32),
                jnp.zeros((0, temp_classes), jnp.float32))

    # --- VMEM-budgeted batch tile -------------------------------------------------
    try:
        vmem_cap = int(pltpu.get_tpu_info().vmem_capacity_bytes)
    except Exception:
        vmem_cap = 64 * 1024 * 1024          # conservative (v7x-sized) fallback
    budget = int(0.75 * vmem_cap)

    per_row_io = 4 * (input_size + n_head)   # x block + both output blocks, per row
    per_row_scratch = 4 * (64 + 32)          # h1/h2 intermediates, per row
    weight_bytes = 4 * (input_size * 64 + 64 + 64 * 32 + 32
                        + 32 * rain_classes + rain_classes
                        + 32 * temp_classes + temp_classes)

    rows_budget = (budget - 4 * weight_bytes) // (2 * per_row_io + per_row_scratch)
    rows_budget = max(8, _round_down(int(rows_budget), 8))

    tile_b = max(8, min(_round_up(tb, 8), rows_budget))
    if B >= 16:
        # ensure >= 2 grid steps so v7x's two TensorCores both get work
        tile_b = min(tile_b, _round_up(-(-B // 2), 8))
    if tile_b >= B:
        tile_b = B                           # single full-batch block (ok if B % 8 != 0)

    grid = (pl.cdiv(B, tile_b),)             # ragged last block masked by Pallas

    working_set = 2 * tile_b * per_row_io + tile_b * per_row_scratch \
        + 2 * weight_bytes + (2 << 20)
    vmem_limit = int(min(vmem_cap, max(working_set, 16 << 20)))

    # --- specs ---------------------------------------------------------------------
    def pinned(shape):
        # whole array as one block, same block every step -> resident in VMEM
        return pl.BlockSpec(shape, lambda i: (0,) * len(shape))

    in_specs = [
        pl.BlockSpec((tile_b, input_size), lambda i: (i, 0)),        # x: tiled over batch
        pinned(params["w1"].shape), pinned(params["b1"].shape),
        pinned(params["w2"].shape), pinned(params["b2"].shape),
        pinned(params["w_rain"].shape), pinned(params["b_rain"].shape),
        pinned(params["w_temp"].shape), pinned(params["b_temp"].shape),
    ]
    out_specs = (
        pl.BlockSpec((tile_b, rain_classes), lambda i: (i, 0)),
        pl.BlockSpec((tile_b, temp_classes), lambda i: (i, 0)),
    )
    out_shape = (
        jax.ShapeDtypeStruct((B, rain_classes), jnp.float32),
        jax.ShapeDtypeStruct((B, temp_classes), jnp.float32),
    )

    cost = pl.CostEstimate(
        flops=2 * B * (input_size * 64 + 64 * 32 + 32 * n_head),
        transcendentals=0,
        bytes_accessed=4 * B * (input_size + n_head) + weight_bytes,
    )

    rain_logits, temp_logits = pl.pallas_call(
        dual_mlp_kernel,
        out_shape=out_shape,
        grid=grid,
        in_specs=in_specs,
        out_specs=out_specs,
        cost_estimate=cost,
        compiler_params=pltpu.CompilerParams(
            dimension_semantics=("parallel",),
            vmem_limit_bytes=vmem_limit),
    )(x, params["w1"], params["b1"], params["w2"], params["b2"],
      params["w_rain"], params["b_rain"], params["w_temp"], params["b_temp"])

    return rain_logits, temp_logits


def init_params(key, input_size, rain_classes, temp_classes):
    """Deterministic synthetic init matching the PyTorch module's shapes."""
    ks = jax.random.split(key, 8)

    def linear(kw, kb, fan_in, fan_out):
        # uniform(-1/sqrt(fan_in), 1/sqrt(fan_in)), like nn.Linear's default
        bound = 1.0 / jnp.sqrt(jnp.float32(fan_in))
        w = jax.random.uniform(kw, (fan_in, fan_out), jnp.float32, -bound, bound)
        b = jax.random.uniform(kb, (1, fan_out), jnp.float32, -bound, bound)
        return w, b

    w1, b1 = linear(ks[0], ks[1], input_size, 64)
    w2, b2 = linear(ks[2], ks[3], 64, 32)
    wr, br = linear(ks[4], ks[5], 32, rain_classes)
    wt, bt = linear(ks[6], ks[7], 32, temp_classes)
    return {"w1": w1, "b1": b1, "w2": w2, "b2": b2,
            "w_rain": wr, "b_rain": br, "w_temp": wt, "b_temp": bt}


def _reference(x, params):
    h1 = jnp.maximum(x @ params["w1"] + params["b1"], 0.0)
    h2 = jnp.maximum(h1 @ params["w2"] + params["b2"], 0.0)
    return (h2 @ params["w_rain"] + params["b_rain"],
            h2 @ params["w_temp"] + params["b_temp"])


if __name__ == "__main__":
    key = jax.random.PRNGKey(0)
    k_x, k_p = jax.random.split(key)

    batch = 8
    input_size = 16
    rain_classes = 3
    temp_classes = 4

    x = jax.random.normal(k_x, (batch, input_size), jnp.float32)
    params = init_params(k_p, input_size, rain_classes, temp_classes)

    rain_logits, temp_logits = dual_output_nn(x, params)
    jax.block_until_ready((rain_logits, temp_logits))

    assert rain_logits.shape == (batch, rain_classes)
    assert temp_logits.shape == (batch, temp_classes)

    rain_ref, temp_ref = _reference(x, params)
    assert jnp.allclose(rain_logits, rain_ref, rtol=1e-5, atol=1e-5)
    assert jnp.allclose(temp_logits, temp_ref, rtol=1e-5, atol=1e-5)

    print("KERNEL_OK")
</pallas_src>

<mosaic_0001>
module attributes {stable_mosaic.version = 11 : i64} {
  func.func @dual_mlp_kernel(%arg0: i32, %arg1: memref<8x16xf32, #tpu.memory_space<vmem>>, %arg2: memref<16x64xf32, #tpu.memory_space<vmem>>, %arg3: memref<1x64xf32, #tpu.memory_space<vmem>>, %arg4: memref<64x32xf32, #tpu.memory_space<vmem>>, %arg5: memref<1x32xf32, #tpu.memory_space<vmem>>, %arg6: memref<32x3xf32, #tpu.memory_space<vmem>>, %arg7: memref<1x3xf32, #tpu.memory_space<vmem>>, %arg8: memref<32x4xf32, #tpu.memory_space<vmem>>, %arg9: memref<1x4xf32, #tpu.memory_space<vmem>>, %arg10: memref<8x3xf32, #tpu.memory_space<vmem>>, %arg11: memref<8x4xf32, #tpu.memory_space<vmem>>) attributes {dimension_semantics = [#tpu.dimension_semantics<parallel>], iteration_bounds = array<i64: 1>, scalar_prefetch = 0 : i64, scratch_operands = 0 : i64, tpu.core_type = #tpu.core_type<tc>, window_params = [{transform_indices = @transform_0, window_bounds = array<i64: 8, 16>}, {pipeline_mode = #tpu.pipeline_mode<synchronous>, transform_indices = @transform_1, window_bounds = array<i64: 16, 64>}, {pipeline_mode = #tpu.pipeline_mode<synchronous>, transform_indices = @transform_2, window_bounds = array<i64: 1, 64>}, {pipeline_mode = #tpu.pipeline_mode<synchronous>, transform_indices = @transform_3, window_bounds = array<i64: 64, 32>}, {pipeline_mode = #tpu.pipeline_mode<synchronous>, transform_indices = @transform_4, window_bounds = array<i64: 1, 32>}, {pipeline_mode = #tpu.pipeline_mode<synchronous>, transform_indices = @transform_5, window_bounds = array<i64: 32, 3>}, {pipeline_mode = #tpu.pipeline_mode<synchronous>, transform_indices = @transform_6, window_bounds = array<i64: 1, 3>}, {pipeline_mode = #tpu.pipeline_mode<synchronous>, transform_indices = @transform_7, window_bounds = array<i64: 32, 4>}, {pipeline_mode = #tpu.pipeline_mode<synchronous>, transform_indices = @transform_8, window_bounds = array<i64: 1, 4>}, {transform_indices = @transform_9, window_bounds = array<i64: 8, 3>}, {transform_indices = @transform_10, window_bounds = array<i64: 8, 4>}]} {
    %c0 = arith.constant 0 : index
    %c0_0 = arith.constant 0 : index
    %0 = vector.load %arg1[%c0, %c0_0] : memref<8x16xf32, #tpu.memory_space<vmem>>, vector<8x16xf32>
    %c0_1 = arith.constant 0 : index
    %c0_2 = arith.constant 0 : index
    %1 = vector.load %arg2[%c0_1, %c0_2] : memref<16x64xf32, #tpu.memory_space<vmem>>, vector<16x64xf32>
    %cst = arith.constant dense<0.000000e+00> : vector<8x64xf32>
    %2 = tpu.matmul %0, %1, %cst {dimension_numbers = #tpu.dot_dimension_numbers<[1], [0], [0], [1], [0, 0, 1, 1], [], []>} : vector<8x16xf32>, vector<16x64xf32>, vector<8x64xf32> -> vector<8x64xf32>
    %c0_3 = arith.constant 0 : index
    %c0_4 = arith.constant 0 : index
    %3 = vector.load %arg3[%c0_3, %c0_4] : memref<1x64xf32, #tpu.memory_space<vmem>>, vector<1x64xf32>
    %4 = vector.broadcast %3 : vector<1x64xf32> to vector<8x64xf32>
    %5 = arith.addf %2, %4 : vector<8x64xf32>
    %cst_5 = arith.constant 0.000000e+00 : f32
    %6 = vector.broadcast %cst_5 : f32 to vector<8x64xf32>
    %7 = arith.maximumf %5, %6 : vector<8x64xf32>
    %c0_6 = arith.constant 0 : index
    %c0_7 = arith.constant 0 : index
    %8 = vector.load %arg4[%c0_6, %c0_7] : memref<64x32xf32, #tpu.memory_space<vmem>>, vector<64x32xf32>
    %cst_8 = arith.constant dense<0.000000e+00> : vector<8x32xf32>
    %9 = tpu.matmul %7, %8, %cst_8 {dimension_numbers = #tpu.dot_dimension_numbers<[1], [0], [0], [1], [0, 0, 1, 1], [], []>} : vector<8x64xf32>, vector<64x32xf32>, vector<8x32xf32> -> vector<8x32xf32>
    %c0_9 = arith.constant 0 : index
    %c0_10 = arith.constant 0 : index
    %10 = vector.load %arg5[%c0_9, %c0_10] : memref<1x32xf32, #tpu.memory_space<vmem>>, vector<1x32xf32>
    %11 = vector.broadcast %10 : vector<1x32xf32> to vector<8x32xf32>
    %12 = arith.addf %9, %11 : vector<8x32xf32>
    %cst_11 = arith.constant 0.000000e+00 : f32
    %13 = vector.broadcast %cst_11 : f32 to vector<8x32xf32>
    %14 = arith.maximumf %12, %13 : vector<8x32xf32>
    %c0_12 = arith.constant 0 : index
    %c0_13 = arith.constant 0 : index
    %15 = vector.load %arg6[%c0_12, %c0_13] : memref<32x3xf32, #tpu.memory_space<vmem>>, vector<32x3xf32>
    %cst_14 = arith.constant dense<0.000000e+00> : vector<8x3xf32>
    %16 = tpu.matmul %14, %15, %cst_14 {dimension_numbers = #tpu.dot_dimension_numbers<[1], [0], [0], [1], [0, 0, 1, 1], [], []>} : vector<8x32xf32>, vector<32x3xf32>, vector<8x3xf32> -> vector<8x3xf32>
    %c0_15 = arith.constant 0 : index
    %c0_16 = arith.constant 0 : index
    %17 = vector.load %arg7[%c0_15, %c0_16] : memref<1x3xf32, #tpu.memory_space<vmem>>, vector<1x3xf32>
    %18 = vector.broadcast %17 : vector<1x3xf32> to vector<8x3xf32>
    %19 = arith.addf %16, %18 : vector<8x3xf32>
    %c0_17 = arith.constant 0 : index
    %c0_18 = arith.constant 0 : index
    %20 = vector.load %arg10[%c0_17, %c0_18] : memref<8x3xf32, #tpu.memory_space<vmem>>, vector<8x3xf32>
    tpu.vector_store %arg10[%c0_17, %c0_18], %19 {strides = array<i32>} : memref<8x3xf32, #tpu.memory_space<vmem>>, vector<8x3xf32>,
    %c0_19 = arith.constant 0 : index
    %c0_20 = arith.constant 0 : index
    %21 = vector.load %arg8[%c0_19, %c0_20] : memref<32x4xf32, #tpu.memory_space<vmem>>, vector<32x4xf32>
    %cst_21 = arith.constant dense<0.000000e+00> : vector<8x4xf32>
    %22 = tpu.matmul %14, %21, %cst_21 {dimension_numbers = #tpu.dot_dimension_numbers<[1], [0], [0], [1], [0, 0, 1, 1], [], []>} : vector<8x32xf32>, vector<32x4xf32>, vector<8x4xf32> -> vector<8x4xf32>
    %c0_22 = arith.constant 0 : index
    %c0_23 = arith.constant 0 : index
    %23 = vector.load %arg9[%c0_22, %c0_23] : memref<1x4xf32, #tpu.memory_space<vmem>>, vector<1x4xf32>
    %24 = vector.broadcast %23 : vector<1x4xf32> to vector<8x4xf32>
    %25 = arith.addf %22, %24 : vector<8x4xf32>
    %c0_24 = arith.constant 0 : index
    %c0_25 = arith.constant 0 : index
    %26 = vector.load %arg11[%c0_24, %c0_25] : memref<8x4xf32, #tpu.memory_space<vmem>>, vector<8x4xf32>
    tpu.vector_store %arg11[%c0_24, %c0_25], %25 {strides = array<i32>} : memref<8x4xf32, #tpu.memory_space<vmem>>, vector<8x4xf32>,
    return
  }
  func.func @transform_0(%arg0: i32) -> (i32, i32) {
    %c0_i32 = arith.constant 0 : i32
    %c0_i32_0 = arith.constant 0 : i32
    return %arg0, %c0_i32 : i32, i32
  }
  func.func @transform_1(%arg0: i32) -> (i32, i32) {
    %c0_i32 = arith.constant 0 : i32
    %c0_i32_0 = arith.constant 0 : i32
    %c0_i32_1 = arith.constant 0 : i32
    return %c0_i32, %c0_i32_0 : i32, i32
  }
  func.func @transform_2(%arg0: i32) -> (i32, i32) {
    %c0_i32 = arith.constant 0 : i32
    %c0_i32_0 = arith.constant 0 : i32
    %c0_i32_1 = arith.constant 0 : i32
    return %c0_i32, %c0_i32_0 : i32, i32
  }
  func.func @transform_3(%arg0: i32) -> (i32, i32) {
    %c0_i32 = arith.constant 0 : i32
    %c0_i32_0 = arith.constant 0 : i32
    %c0_i32_1 = arith.constant 0 : i32
    return %c0_i32, %c0_i32_0 : i32, i32
  }
  func.func @transform_4(%arg0: i32) -> (i32, i32) {
    %c0_i32 = arith.constant 0 : i32
    %c0_i32_0 = arith.constant 0 : i32
    %c0_i32_1 = arith.constant 0 : i32
    return %c0_i32, %c0_i32_0 : i32, i32
  }
  func.func @transform_5(%arg0: i32) -> (i32, i32) {
    %c0_i32 = arith.constant 0 : i32
    %c0_i32_0 = arith.constant 0 : i32
    %c0_i32_1 = arith.constant 0 : i32
    return %c0_i32, %c0_i32_0 : i32, i32
  }
  func.func @transform_6(%arg0: i32) -> (i32, i32) {
    %c0_i32 = arith.constant 0 : i32
    %c0_i32_0 = arith.constant 0 : i32
    %c0_i32_1 = arith.constant 0 : i32
    return %c0_i32, %c0_i32_0 : i32, i32
  }
  func.func @transform_7(%arg0: i32) -> (i32, i32) {
    %c0_i32 = arith.constant 0 : i32
    %c0_i32_0 = arith.constant 0 : i32
    %c0_i32_1 = arith.constant 0 : i32
    return %c0_i32, %c0_i32_0 : i32, i32
  }
  func.func @transform_8(%arg0: i32) -> (i32, i32) {
    %c0_i32 = arith.constant 0 : i32
    %c0_i32_0 = arith.constant 0 : i32
    %c0_i32_1 = arith.constant 0 : i32
    return %c0_i32, %c0_i32_0 : i32, i32
  }
  func.func @transform_9(%arg0: i32) -> (i32, i32) {
    %c0_i32 = arith.constant 0 : i32
    %c0_i32_0 = arith.constant 0 : i32
    return %arg0, %c0_i32 : i32, i32
  }
  func.func @transform_10(%arg0: i32) -> (i32, i32) {
    %c0_i32 = arith.constant 0 : i32
    %c0_i32_0 = arith.constant 0 : i32
    return %arg0, %c0_i32 : i32, i32
  }
}

</mosaic_0001>

<llo_original>
// kernel: tpu_custom_call.1
$region0: #{tpu_custom_call.1}
  #allocation0 [shape = 'u32[]', space=smem, size = 0x4, offset = 0x4, fixed_abs, tag = 'smem constant byte address 0x4 - core index']
  #allocation1 [shape = 'u32[144,128]{1,0:T(1,128)}', space=vmem, size = 0x12000, scoped, tag = 'internal scratch']
  %s0 = inlined_call_operand.vmem [shape: f32[8,16], index: 0, kind: input, shape index: {}]
  %s1 = inlined_call_operand.vmem [shape: f32[16,64], index: 1, kind: input, shape index: {}]
  %s2 = inlined_call_operand.vmem [shape: f32[1,64], index: 2, kind: input, shape index: {}]
  %s3 = inlined_call_operand.vmem [shape: f32[64,32], index: 3, kind: input, shape index: {}]
  %s4 = inlined_call_operand.vmem [shape: f32[1,32], index: 4, kind: input, shape index: {}]
  %s5 = inlined_call_operand.vmem [shape: f32[32,3], index: 5, kind: input, shape index: {}]
  %s6 = inlined_call_operand.vmem [shape: f32[1,3], index: 6, kind: input, shape index: {}]
  %s7 = inlined_call_operand.vmem [shape: f32[32,4], index: 7, kind: input, shape index: {}]
  %s8 = inlined_call_operand.vmem [shape: f32[1,4], index: 8, kind: input, shape index: {}]
  %s9 = inlined_call_operand.vmem [shape: f32[8,3], index: 9, kind: output, shape index: {0}]
  %s10 = inlined_call_operand.vmem [shape: f32[8,4], index: 10, kind: output, shape index: {1}]
  %11 = xla_tuple %s9, %s10
  %s12 = sld [smem:[#allocation0]]
  $region54: #{tpu_custom_call.1} parent=0
    _
  %s14 = ssub.s32 1, %s12
  %s15 = scalar_select 0, %s14, %s12
  // Predicated region
  $region2: #{tpu_custom_call.1} parent=0 // pred_check
    _
  $region3: #{tpu_custom_call.1} parent=0 // pred_check_branch
    %17 = sbr.rel (0) target = $region5
  $region4: #{tpu_custom_call.1} parent=0 // pred_region
    _
  $region5: #{tpu_custom_call.1} parent=0 // pred_fallthru
    _
  // Predicated region
  $region6: #{tpu_custom_call.1} parent=0 // pred_check
    _
  $region7: #{tpu_custom_call.1} parent=0 // pred_check_branch
    %19 = sbr.rel (0) target = $region9
  $region8: #{tpu_custom_call.1} parent=0 // pred_region
    _
  $region9: #{tpu_custom_call.1} parent=0 // pred_fallthru
    _
  // Predicated region
  $region10: #{tpu_custom_call.1} parent=0 // pred_check
    _
  $region11: #{tpu_custom_call.1} parent=0 // pred_check_branch
    %21 = sbr.rel (0) target = $region13
  $region12: #{tpu_custom_call.1} parent=0 // pred_region
    _
  $region13: #{tpu_custom_call.1} parent=0 // pred_fallthru
    _
  // Predicated region
  $region14: #{tpu_custom_call.1} parent=0 // pred_check
    _
  $region15: #{tpu_custom_call.1} parent=0 // pred_check_branch
    %23 = sbr.rel (0) target = $region17
  $region16: #{tpu_custom_call.1} parent=0 // pred_region
    _
  $region17: #{tpu_custom_call.1} parent=0 // pred_fallthru
    _
  // Predicated region
  $region18: #{tpu_custom_call.1} parent=0 // pred_check
    _
  $region19: #{tpu_custom_call.1} parent=0 // pred_check_branch
    %25 = sbr.rel (0) target = $region21
  $region20: #{tpu_custom_call.1} parent=0 // pred_region
    _
  $region21: #{tpu_custom_call.1} parent=0 // pred_fallthru
    _
  // Predicated region
  $region22: #{tpu_custom_call.1} parent=0 // pred_check
    _
  $region23: #{tpu_custom_call.1} parent=0 // pred_check_branch
    %27 = sbr.rel (0) target = $region25
  $region24: #{tpu_custom_call.1} parent=0 // pred_region
    _
  $region25: #{tpu_custom_call.1} parent=0 // pred_fallthru
    _
  // Predicated region
  $region26: #{tpu_custom_call.1} parent=0 // pred_check
    _
  $region27: #{tpu_custom_call.1} parent=0 // pred_check_branch
    %29 = sbr.rel (0) target = $region29
  $region28: #{tpu_custom_call.1} parent=0 // pred_region
    _
  $region29: #{tpu_custom_call.1} parent=0 // pred_fallthru
    _
  // Predicated region
  $region30: #{tpu_custom_call.1} parent=0 // pred_check
    _
  $region31: #{tpu_custom_call.1} parent=0 // pred_check_branch
    %31 = sbr.rel (0) target = $region33
  $region32: #{tpu_custom_call.1} parent=0 // pred_region
    _
  $region33: #{tpu_custom_call.1} parent=0 // pred_fallthru
    _
  // Predicated region
  $region34: #{tpu_custom_call.1} parent=0 // pred_check
    _
  $region35: #{tpu_custom_call.1} parent=0 // pred_check_branch
    %33 = sbr.rel (0) target = $region37
  $region36: #{tpu_custom_call.1} parent=0 // pred_region
    _
  $region37: #{tpu_custom_call.1} parent=0 // pred_fallthru
    _
  %v34 = vld [vmem:[%s0] sm:$0xff]
  %v35 = vld [vmem:[%s1] sm:$0xff]
  %v36 = vld [vmem:[%s1 + $0x8] sm:$0xff]
  %v37 = vld [vmem:[%s2] sm:$0x1]
  %v39 = vlaneseq
  %v40 = vshrl.u32 %v39, 7
  %v41 = vsub.s32 0, %v40
  %v42 = vrot.slane %v37, %v41
  %vm44 = vcmask 130048
  %v46 = vsel %vm44, %v34, 0
  %48 = vmatprep.subr.mxu0 0.0
  %49 = vmatpush1.msra.mxu0 0.0
  %50 = vmatprep.subr.mxu0 0.0
  %51 = vmatpush1.msra.mxu0 0.0
  %52 = vmatprep.subr.mxu0 0.0
  %53 = vmatpush1.msra.mxu0 0.0
  %54 = vmatprep.subr.mxu0 0.0
  %55 = vmatpush1.msra.mxu0 0.0
  %56 = vmatprep.subr.mxu0 0.0
  %57 = vmatpush1.msra.mxu0 0.0
  %58 = vmatprep.subr.mxu0 0.0
  %59 = vmatpush1.msra.mxu0 0.0
  %60 = vmatprep.subr.mxu0 0.0
  %61 = vmatpush1.msra.mxu0 0.0
  %62 = vmatprep.subr.mxu0 0.0
  %63 = vmatpush1.msra.mxu0 0.0
  %64 = vmatprep.subr.mxu0 0.0
  %65 = vmatpush1.msra.mxu0 0.0
  %66 = vmatprep.subr.mxu0 0.0
  %67 = vmatpush1.msra.mxu0 0.0
  %68 = vmatprep.subr.mxu0 0.0
  %69 = vmatpush1.msra.mxu0 0.0
  %70 = vmatprep.subr.mxu0 0.0
  %71 = vmatpush1.msra.mxu0 0.0
  %72 = vmatprep.subr.mxu0 0.0
  %73 = vmatpush1.msra.mxu0 0.0
  %74 = vmatprep.subr.mxu0 0.0
  %75 = vmatpush1.msra.mxu0 0.0
  %76 = vmatprep.subr.mxu0 0.0
  %77 = vmatpush1.msra.mxu0 %v36
  %78 = vmatprep.subr.mxu0 0.0
  %79 = vmatpush1.msra.mxu0 %v35
  %80 = vmatprep.subr.mxu0 0.0
  %81 = vmatpush2.msra.mxu0 0.0
  %82 = vmatprep.subr.mxu0 0.0
  %83 = vmatpush2.msra.mxu0 0.0
  %84 = vmatprep.subr.mxu0 0.0
  %85 = vmatpush2.msra.mxu0 0.0
  %86 = vmatprep.subr.mxu0 0.0
  %87 = vmatpush2.msra.mxu0 0.0
  %88 = vmatprep.subr.mxu0 0.0
  %89 = vmatpush2.msra.mxu0 0.0
  %90 = vmatprep.subr.mxu0 0.0
  %91 = vmatpush2.msra.mxu0 0.0
  %92 = vmatprep.subr.mxu0 0.0
  %93 = vmatpush2.msra.mxu0 0.0
  %94 = vmatprep.subr.mxu0 0.0
  %95 = vmatpush2.msra.mxu0 0.0
  %96 = vmatprep.subr.mxu0 0.0
  %97 = vmatpush2.msra.mxu0 0.0
  %98 = vmatprep.subr.mxu0 0.0
  %99 = vmatpush2.msra.mxu0 0.0
  %100 = vmatprep.subr.mxu0 0.0
  %101 = vmatpush2.msra.mxu0 0.0
  %102 = vmatprep.subr.mxu0 0.0
  %103 = vmatpush2.msra.mxu0 0.0
  %104 = vmatprep.subr.mxu0 0.0
  %105 = vmatpush2.msra.mxu0 0.0
  %106 = vmatprep.subr.mxu0 0.0
  %107 = vmatpush2.msra.mxu0 0.0
  %108 = vmatprep.subr.mxu0 0.0
  %109 = vmatpush2.msra.mxu0 0.0
  %110 = vmatprep.subr.mxu0 0.0
  %111 = vmatpush2.msra.mxu0 0.0
  %112 = vmatprep.mubr.f32.mxu0 0.0
  %113 = vmatmul.mubr.f32.gmra.mxu0 %v46
  %v114 = vpop.f32.mrf.mxu0
  %v115 = vadd.f32 %v42, %v114
  %v116 = vpop.f32.mrf.mxu0
  %117 = vdwg.mxu0
  %v118 = vmax.f32 %v115, 0.0
  %v119 = vld [vmem:[%s3] sm:$0xff]
  %v120 = vld [vmem:[%s3 + $0x8] sm:$0xff]
  %v121 = vld [vmem:[%s3 + $0x10] sm:$0xff]
  %v122 = vld [vmem:[%s3 + $0x18] sm:$0xff]
  %v123 = vld [vmem:[%s3 + $0x20] sm:$0xff]
  %v124 = vld [vmem:[%s3 + $0x28] sm:$0xff]
  %v125 = vld [vmem:[%s3 + $0x30] sm:$0xff]
  %v126 = vld [vmem:[%s3 + $0x38] sm:$0xff]
  %v127 = vld [vmem:[%s4] sm:$0x1]
  %v129 = vlaneseq
  %v130 = vshrl.u32 %v129, 7
  %v131 = vsub.s32 0, %v130
  %v132 = vrot.slane %v127, %v131
  %vm134 = vcmask 523264
  %v136 = vsel %vm134, %v118, 0
  %138 = vmatprep.subr.mxu0 0.0
  %139 = vmatpush1.msra.mxu0 0.0
  %140 = vmatprep.subr.mxu0 0.0
  %141 = vmatpush1.msra.mxu0 0.0
  %142 = vmatprep.subr.mxu0 0.0
  %143 = vmatpush1.msra.mxu0 0.0
  %144 = vmatprep.subr.mxu0 0.0
  %145 = vmatpush1.msra.mxu0 0.0
  %146 = vmatprep.subr.mxu0 0.0
  %147 = vmatpush1.msra.mxu0 0.0
  %148 = vmatprep.subr.mxu0 0.0
  %149 = vmatpush1.msra.mxu0 0.0
  %150 = vmatprep.subr.mxu0 0.0
  %151 = vmatpush1.msra.mxu0 0.0
  %152 = vmatprep.subr.mxu0 0.0
  %153 = vmatpush1.msra.mxu0 0.0
  %154 = vmatprep.subr.mxu0 0.0
  %155 = vmatpush1.msra.mxu0 %v126
  %156 = vmatprep.subr.mxu0 0.0
  %157 = vmatpush1.msra.mxu0 %v125
  %158 = vmatprep.subr.mxu0 0.0
  %159 = vmatpush1.msra.mxu0 %v124
  %160 = vmatprep.subr.mxu0 0.0
  %161 = vmatpush1.msra.mxu0 %v123
  %162 = vmatprep.subr.mxu0 0.0
  %163 = vmatpush1.msra.mxu0 %v122
  %164 = vmatprep.subr.mxu0 0.0
  %165 = vmatpush1.msra.mxu0 %v121
  %166 = vmatprep.subr.mxu0 0.0
  %167 = vmatpush1.msra.mxu0 %v120
  %168 = vmatprep.subr.mxu0 0.0
  %169 = vmatpush1.msra.mxu0 %v119
  %170 = vmatprep.subr.mxu0 0.0
  %171 = vmatpush2.msra.mxu0 0.0
  %172 = vmatprep.subr.mxu0 0.0
  %173 = vmatpush2.msra.mxu0 0.0
  %174 = vmatprep.subr.mxu0 0.0
  %175 = vmatpush2.msra.mxu0 0.0
  %176 = vmatprep.subr.mxu0 0.0
  %177 = vmatpush2.msra.mxu0 0.0
  %178 = vmatprep.subr.mxu0 0.0
  %179 = vmatpush2.msra.mxu0 0.0
  %180 = vmatprep.subr.mxu0 0.0
  %181 = vmatpush2.msra.mxu0 0.0
  %182 = vmatprep.subr.mxu0 0.0
  %183 = vmatpush2.msra.mxu0 0.0
  %184 = vmatprep.subr.mxu0 0.0
  %185 = vmatpush2.msra.mxu0 0.0
  %186 = vmatprep.subr.mxu0 0.0
  %187 = vmatpush2.msra.mxu0 0.0
  %188 = vmatprep.subr.mxu0 0.0
  %189 = vmatpush2.msra.mxu0 0.0
  %190 = vmatprep.subr.mxu0 0.0
  %191 = vmatpush2.msra.mxu0 0.0
  %192 = vmatprep.subr.mxu0 0.0
  %193 = vmatpush2.msra.mxu0 0.0
  %194 = vmatprep.subr.mxu0 0.0
  %195 = vmatpush2.msra.mxu0 0.0
  %196 = vmatprep.subr.mxu0 0.0
  %197 = vmatpush2.msra.mxu0 0.0
  %198 = vmatprep.subr.mxu0 0.0
  %199 = vmatpush2.msra.mxu0 0.0
  %200 = vmatprep.subr.mxu0 0.0
  %201 = vmatpush2.msra.mxu0 0.0
  %202 = vmatprep.mubr.f32.mxu0 0.0
  %203 = vmatmul.mubr.f32.gmra.mxu0 %v136
  %v204 = vpop.f32.mrf.mxu0
  %v205 = vadd.f32 %v132, %v204
  %v206 = vpop.f32.mrf.mxu0
  %207 = vdwg.mxu0
  %v208 = vmax.f32 %v205, 0.0
  %v209 = vld [vmem:[%s5] sm:$0xff]
  %v210 = vld [vmem:[%s5 + $0x8] sm:$0xff]
  %v211 = vld [vmem:[%s5 + $0x10] sm:$0xff]
  %v212 = vld [vmem:[%s5 + $0x18] sm:$0xff]
  %v213 = vld [vmem:[%s6] sm:$0x1]
  %v215 = vlaneseq
  %v216 = vshrl.u32 %v215, 7
  %v217 = vsub.s32 0, %v216
  %v218 = vrot.slane %v213, %v217
  %vm220 = vcmask 261120
  %v222 = vsel %vm220, %v208, 0
  %224 = vmatprep.subr.mxu0 0.0
  %225 = vmatpush1.msra.mxu0 0.0
  %226 = vmatprep.subr.mxu0 0.0
  %227 = vmatpush1.msra.mxu0 0.0
  %228 = vmatprep.subr.mxu0 0.0
  %229 = vmatpush1.msra.mxu0 0.0
  %230 = vmatprep.subr.mxu0 0.0
  %231 = vmatpush1.msra.mxu0 0.0
  %232 = vmatprep.subr.mxu0 0.0
  %233 = vmatpush1.msra.mxu0 0.0
  %234 = vmatprep.subr.mxu0 0.0
  %235 = vmatpush1.msra.mxu0 0.0
  %236 = vmatprep.subr.mxu0 0.0
  %237 = vmatpush1.msra.mxu0 0.0
  %238 = vmatprep.subr.mxu0 0.0
  %239 = vmatpush1.msra.mxu0 0.0
  %240 = vmatprep.subr.mxu0 0.0
  %241 = vmatpush1.msra.mxu0 0.0
  %242 = vmatprep.subr.mxu0 0.0
  %243 = vmatpush1.msra.mxu0 0.0
  %244 = vmatprep.subr.mxu0 0.0
  %245 = vmatpush1.msra.mxu0 0.0
  %246 = vmatprep.subr.mxu0 0.0
  %247 = vmatpush1.msra.mxu0 0.0
  %248 = vmatprep.subr.mxu0 0.0
  %249 = vmatpush1.msra.mxu0 %v212
  %250 = vmatprep.subr.mxu0 0.0
  %251 = vmatpush1.msra.mxu0 %v211
  %252 = vmatprep.subr.mxu0 0.0
  %253 = vmatpush1.msra.mxu0 %v210
  %254 = vmatprep.subr.mxu0 0.0
  %255 = vmatpush1.msra.mxu0 %v209
  %256 = vmatprep.subr.mxu0 0.0
  %257 = vmatpush2.msra.mxu0 0.0
  %258 = vmatprep.subr.mxu0 0.0
  %259 = vmatpush2.msra.mxu0 0.0
  %260 = vmatprep.subr.mxu0 0.0
  %261 = vmatpush2.msra.mxu0 0.0
  %262 = vmatprep.subr.mxu0 0.0
  %263 = vmatpush2.msra.mxu0 0.0
  %264 = vmatprep.subr.mxu0 0.0
  %265 = vmatpush2.msra.mxu0 0.0
  %266 = vmatprep.subr.mxu0 0.0
  %267 = vmatpush2.msra.mxu0 0.0
  %268 = vmatprep.subr.mxu0 0.0
  %269 = vmatpush2.msra.mxu0 0.0
  %270 = vmatprep.subr.mxu0 0.0
  %271 = vmatpush2.msra.mxu0 0.0
  %272 = vmatprep.subr.mxu0 0.0
  %273 = vmatpush2.msra.mxu0 0.0
  %274 = vmatprep.subr.mxu0 0.0
  %275 = vmatpush2.msra.mxu0 0.0
  %276 = vmatprep.subr.mxu0 0.0
  %277 = vmatpush2.msra.mxu0 0.0
  %278 = vmatprep.subr.mxu0 0.0
  %279 = vmatpush2.msra.mxu0 0.0
  %280 = vmatprep.subr.mxu0 0.0
  %281 = vmatpush2.msra.mxu0 0.0
  %282 = vmatprep.subr.mxu0 0.0
  %283 = vmatpush2.msra.mxu0 0.0
  %284 = vmatprep.subr.mxu0 0.0
  %285 = vmatpush2.msra.mxu0 0.0
  %286 = vmatprep.subr.mxu0 0.0
  %287 = vmatpush2.msra.mxu0 0.0
  %288 = vmatprep.mubr.f32.mxu0 0.0
  %289 = vmatmul.mubr.f32.gmra.mxu0 %v222
  %v290 = vpop.f32.mrf.mxu0
  %v291 = vadd.f32 %v218, %v290
  %v292 = vpop.f32.mrf.mxu0
  %293 = vdwg.mxu0
  %vm294 = vcmask 23552
  %295 = vst.msk [vmem:[%s9] sm:$0xff] %vm294, %v291
  %v296 = vld [vmem:[%s7] sm:$0xff]
  %v297 = vld [vmem:[%s7 + $0x8] sm:$0xff]
  %v298 = vld [vmem:[%s7 + $0x10] sm:$0xff]
  %v299 = vld [vmem:[%s7 + $0x18] sm:$0xff]
  %v300 = vld [vmem:[%s8] sm:$0x1]
  %v302 = vlaneseq
  %v303 = vshrl.u32 %v302, 7
  %v304 = vsub.s32 0, %v303
  %v305 = vrot.slane %v300, %v304
  %307 = vmatprep.subr.mxu0 0.0
  %308 = vmatpush1.msra.mxu0 0.0
  %309 = vmatprep.subr.mxu0 0.0
  %310 = vmatpush1.msra.mxu0 0.0
  %311 = vmatprep.subr.mxu0 0.0
  %312 = vmatpush1.msra.mxu0 0.0
  %313 = vmatprep.subr.mxu0 0.0
  %314 = vmatpush1.msra.mxu0 0.0
  %315 = vmatprep.subr.mxu0 0.0
  %316 = vmatpush1.msra.mxu0 0.0
  %317 = vmatprep.subr.mxu0 0.0
  %318 = vmatpush1.msra.mxu0 0.0
  %319 = vmatprep.subr.mxu0 0.0
  %320 = vmatpush1.msra.mxu0 0.0
  %321 = vmatprep.subr.mxu0 0.0
  %322 = vmatpush1.msra.mxu0 0.0
  %323 = vmatprep.subr.mxu0 0.0
  %324 = vmatpush1.msra.mxu0 0.0
  %325 = vmatprep.subr.mxu0 0.0
  %326 = vmatpush1.msra.mxu0 0.0
  %327 = vmatprep.subr.mxu0 0.0
  %328 = vmatpush1.msra.mxu0 0.0
  %329 = vmatprep.subr.mxu0 0.0
  %330 = vmatpush1.msra.mxu0 0.0
  %331 = vmatprep.subr.mxu0 0.0
  %332 = vmatpush1.msra.mxu0 %v299
  %333 = vmatprep.subr.mxu0 0.0
  %334 = vmatpush1.msra.mxu0 %v298
  %335 = vmatprep.subr.mxu0 0.0
  %336 = vmatpush1.msra.mxu0 %v297
  %337 = vmatprep.subr.mxu0 0.0
  %338 = vmatpush1.msra.mxu0 %v296
  %339 = vmatprep.subr.mxu0 0.0
  %340 = vmatpush2.msra.mxu0 0.0
  %341 = vmatprep.subr.mxu0 0.0
  %342 = vmatpush2.msra.mxu0 0.0
  %343 = vmatprep.subr.mxu0 0.0
  %344 = vmatpush2.msra.mxu0 0.0
  %345 = vmatprep.subr.mxu0 0.0
  %346 = vmatpush2.msra.mxu0 0.0
  %347 = vmatprep.subr.mxu0 0.0
  %348 = vmatpush2.msra.mxu0 0.0
  %349 = vmatprep.subr.mxu0 0.0
  %350 = vmatpush2.msra.mxu0 0.0
  %351 = vmatprep.subr.mxu0 0.0
  %352 = vmatpush2.msra.mxu0 0.0
  %353 = vmatprep.subr.mxu0 0.0
  %354 = vmatpush2.msra.mxu0 0.0
  %355 = vmatprep.subr.mxu0 0.0
  %356 = vmatpush2.msra.mxu0 0.0
  %357 = vmatprep.subr.mxu0 0.0
  %358 = vmatpush2.msra.mxu0 0.0
  %359 = vmatprep.subr.mxu0 0.0
  %360 = vmatpush2.msra.mxu0 0.0
  %361 = vmatprep.subr.mxu0 0.0
  %362 = vmatpush2.msra.mxu0 0.0
  %363 = vmatprep.subr.mxu0 0.0
  %364 = vmatpush2.msra.mxu0 0.0
  %365 = vmatprep.subr.mxu0 0.0
  %366 = vmatpush2.msra.mxu0 0.0
  %367 = vmatprep.subr.mxu0 0.0
  %368 = vmatpush2.msra.mxu0 0.0
  %369 = vmatprep.subr.mxu0 0.0
  %370 = vmatpush2.msra.mxu0 0.0
  %371 = vmatprep.mubr.f32.mxu0 0.0
  %372 = vmatmul.mubr.f32.gmra.mxu0 %v222
  %v373 = vpop.f32.mrf.mxu0
  %v374 = vadd.f32 %v305, %v373
  %v375 = vpop.f32.mrf.mxu0
  %376 = vdwg.mxu0
  %vm377 = vcmask 31744
  %378 = vst.msk [vmem:[%s10] sm:$0xff] %vm377, %v374
  // Predicated region
  $region38: #{tpu_custom_call.1} parent=0 // pred_check
    _
  $region39: #{tpu_custom_call.1} parent=0 // pred_check_branch
    %380 = sbr.rel (0) target = $region41
  $region40: #{tpu_custom_call.1} parent=0 // pred_region
    _
  $region41: #{tpu_custom_call.1} parent=0 // pred_fallthru
    _
  // Predicated region
  $region42: #{tpu_custom_call.1} parent=0 // pred_check
    _
  $region43: #{tpu_custom_call.1} parent=0 // pred_check_branch
    %382 = sbr.rel (0) target = $region45
  $region44: #{tpu_custom_call.1} parent=0 // pred_region
    _
  $region45: #{tpu_custom_call.1} parent=0 // pred_fallthru
    _
  // Predicated region
  $region46: #{tpu_custom_call.1} parent=0 // pred_check
    _
  $region47: #{tpu_custom_call.1} parent=0 // pred_check_branch
    %384 = sbr.rel (0) target = $region49
  $region48: #{tpu_custom_call.1} parent=0 // pred_region
    _
  $region49: #{tpu_custom_call.1} parent=0 // pred_fallthru
    _
  // Predicated region
  $region50: #{tpu_custom_call.1} parent=0 // pred_check
    _
  $region51: #{tpu_custom_call.1} parent=0 // pred_check_branch
    %386 = sbr.rel (0) target = $region53
  $region52: #{tpu_custom_call.1} parent=0 // pred_region
    _
  $region53: #{tpu_custom_call.1} parent=0 // pred_fallthru
    _

</llo_original>
